<compile_context>
chip_gen: v7x
topology: tpu7x:2x2x1
jax: 0.10.0
libtpu: 0.0.40
codegen_flags: <defaults>
</compile_context>

<pallas_src>
import jax
import jax.numpy as jnp
from jax.experimental import pallas as pl
from jax.experimental.pallas import tpu as pltpu


def _attshrink_kernel(x_ref, w1_ref, shift_ref, w2_ref, b2_ref, o_ref):
    # x_ref:     (tb, C_in, ts)  spatial positions on the lane axis
    # w1_ref:    (C, C_in)       conv_1 weight with BN(eval) scale pre-folded
    # shift_ref: (C, 1)          BN shift (beta - mean * scale)
    # w2_ref:    (CO, C)         shrink weight
    # b2_ref:    (CO, 1)         shrink bias
    # o_ref:     (tb, CO, ts)    lane-dense output tile
    w1 = w1_ref[...]
    shift = shift_ref[...]
    w2 = w2_ref[...]
    b2 = b2_ref[...]
    tb = x_ref.shape[0]
    # Static unroll over the (small) batch block: plain 2D MXU matmuls, no
    # in-kernel transposes / batched dot_general.
    for b in range(tb):
        xb = x_ref[b]                                          # (C_in, ts)
        h = jnp.dot(w1, xb, preferred_element_type=jnp.float32)
        h = jnp.maximum(h + shift, 0.0)                        # BN shift + ReLU
        y = jnp.dot(w2, h, preferred_element_type=jnp.float32) + b2
        o_ref[b] = y.astype(o_ref.dtype)


def _round_up(x, m):
    return ((x + m - 1) // m) * m


def _choose_tiles(B, S, C_in, CO, itemsize, *, max_ts=8192, target_lanes=1024,
                  vmem_budget=10 << 20):
    """Pick (tb, ts): batch block and lane-dense spatial tile.

    ts is either the full spatial extent S or a multiple of 128, chosen so
    tiles are balanced (padding waste < 128 lanes per tile).  Narrow spatial
    slabs are compensated by blocking several batch elements per grid step,
    subject to a double-buffered VMEM budget (safe under v5e's 16 MiB default
    scoped VMEM).  At least 2 grid steps are kept when possible so v7x's two
    TensorCores both get work.
    """
    # Balanced spatial tile.
    n_tiles = max(1, pl.cdiv(S, max_ts))
    ts = _round_up(pl.cdiv(S, n_tiles), 128)
    if ts >= S:
        ts = S                                   # full-extent block, always legal

    # Batch blocking for narrow spatial slabs.
    tb = 1
    if ts < target_lanes:
        tb = max(1, min(B, target_lanes // max(ts, 1)))

    # VMEM cap: double-buffered x + out blocks must fit comfortably.
    def vmem_bytes(tb_, ts_):
        return 2 * tb_ * ts_ * (C_in + CO) * itemsize

    while tb > 1 and vmem_bytes(tb, ts) > vmem_budget:
        tb -= 1
    while ts > 128 and vmem_bytes(tb, ts) > vmem_budget:
        ts = max(128, _round_up(ts // 2, 128))   # multiple of 128 < previous ts

    # Megacore (v7x): keep >= 2 grid steps when the problem allows it.
    def steps(tb_, ts_):
        return pl.cdiv(B, tb_) * pl.cdiv(S, ts_)

    if steps(tb, ts) < 2:
        if tb > 1:
            tb = pl.cdiv(tb, 2)
        elif S > 128:
            ts = max(128, _round_up(pl.cdiv(ts, 2), 128))
    return tb, ts


def attshrink_forward(x, params, transform_dim, *, max_ts=8192):
    """x: (B, C_in, T, V) -> (B, C_out // transform_dim, transform_dim, T, V)."""
    B, C_in, T, V = x.shape
    C = params["w1"].shape[0]              # conv_1: C_in -> C_in
    CO = params["w2"].shape[0]             # shrink: C_in -> C_out
    assert params["w1"].shape == (C_in, C_in)
    assert params["w2"].shape == (CO, C_in)
    assert CO % transform_dim == 0, "out_channels must be divisible by TRANSFORM_DIM"

    # Layout-native view: pure reshape, no transpose, no dtype cast.
    S = T * V
    x3 = x.reshape(B, C_in, S)

    # Fold BN(eval) scale into conv_1 weight; keep only the shift in-kernel.
    eps = 1e-5
    scale = params["bn_gamma"] / jnp.sqrt(params["bn_var"] + eps)          # (C,)
    shift = params["bn_beta"] - params["bn_mean"] * scale                  # (C,)
    w1s = (params["w1"] * scale[:, None]).astype(jnp.float32)              # (C, C_in)
    shift2 = shift.reshape(C, 1).astype(jnp.float32)
    w2 = params["w2"].astype(jnp.float32)                                  # (CO, C)
    b2 = params["b2"].reshape(CO, 1).astype(jnp.float32)

    tb, ts = _choose_tiles(B, S, C_in, CO, x.dtype.itemsize, max_ts=max_ts)
    grid = (pl.cdiv(B, tb), pl.cdiv(S, ts))

    flops = 2 * B * S * (C_in * C + C * CO)
    bytes_accessed = (x.dtype.itemsize * B * S * (C_in + CO)
                      + 4 * (C * C_in + C + CO * C + CO))

    out = pl.pallas_call(
        _attshrink_kernel,
        out_shape=jax.ShapeDtypeStruct((B, CO, S), x.dtype),
        grid_spec=pltpu.PrefetchScalarGridSpec(
            num_scalar_prefetch=0,
            grid=grid,
            in_specs=[
                pl.BlockSpec((tb, C_in, ts), lambda b, s: (b, 0, s)),  # x slab
                pl.BlockSpec((C, C_in), lambda b, s: (0, 0)),          # w1*scale
                pl.BlockSpec((C, 1), lambda b, s: (0, 0)),             # bn shift
                pl.BlockSpec((CO, C), lambda b, s: (0, 0)),            # w2
                pl.BlockSpec((CO, 1), lambda b, s: (0, 0)),            # bias
            ],
            out_specs=pl.BlockSpec((tb, CO, ts), lambda b, s: (b, 0, s)),
        ),
        compiler_params=pltpu.CompilerParams(
            dimension_semantics=("parallel", "parallel")),
        cost_estimate=pl.CostEstimate(
            flops=flops, transcendentals=0, bytes_accessed=bytes_accessed),
    )(x3, w1s, shift2, w2, b2)

    # (B, CO, T*V) -> (B, CO // TD, TD, T, V): pure reshape, matches torch .view
    return out.reshape(B, CO // transform_dim, transform_dim, T, V)


def make_params(key, in_channels, out_channels):
    k1, k2, k3, k4, k5, k6, k7 = jax.random.split(key, 7)
    return {
        # conv_1: Conv2d(in_channels, in_channels, 1, bias=False) -> (C_in, C_in)
        "w1": 0.1 * jax.random.normal(k1, (in_channels, in_channels), jnp.float32),
        # bn_1 (eval-mode running stats + affine)
        "bn_gamma": 1.0 + 0.1 * jax.random.normal(k2, (in_channels,), jnp.float32),
        "bn_beta": 0.1 * jax.random.normal(k3, (in_channels,), jnp.float32),
        "bn_mean": 0.1 * jax.random.normal(k4, (in_channels,), jnp.float32),
        "bn_var": jnp.abs(jax.random.normal(k5, (in_channels,), jnp.float32)) + 0.5,
        # shrink: Conv2d(in_channels, out_channels, 1) with bias
        "w2": 0.1 * jax.random.normal(k6, (out_channels, in_channels), jnp.float32),
        "b2": 0.1 * jax.random.normal(k7, (out_channels,), jnp.float32),
    }


def _reference(x, params, transform_dim):
    """Pure-JAX reference of the same eval-mode forward."""
    B, C, T, V = x.shape
    eps = 1e-5
    h = jnp.einsum("bctv,oc->botv", x, params["w1"])
    scale = params["bn_gamma"] / jnp.sqrt(params["bn_var"] + eps)
    shift = params["bn_beta"] - params["bn_mean"] * scale
    h = jnp.maximum(h * scale[None, :, None, None] + shift[None, :, None, None], 0.0)
    y = jnp.einsum("bctv,oc->botv", h, params["w2"]) \
        + params["b2"][None, :, None, None]
    CO = params["w2"].shape[0]
    return y.reshape(B, CO // transform_dim, transform_dim, T, V)


if __name__ == "__main__":
    # Small shapes: B=2, in_channels=32, T=9 (module default), V=16
    #   => S = T*V = 144 (not a multiple of 128: exercises Pallas edge blocks,
    #      no wrapper pad/slice passes).
    B, C_in, T, V = 2, 32, 9, 16
    transform_dim = 3
    out_channels = 9                       # view -> (B, 3, 3, T, V)

    key = jax.random.PRNGKey(0)
    kx, kp = jax.random.split(key)
    x = jax.random.normal(kx, (B, C_in, T, V), jnp.float32)
    params = make_params(kp, C_in, out_channels)

    out = attshrink_forward(x, params, transform_dim)
    out = jax.block_until_ready(out)

    ref = _reference(x, params, transform_dim)
    assert out.shape == (B, out_channels // transform_dim, transform_dim, T, V), out.shape
    assert jnp.allclose(out, ref, atol=2e-4, rtol=2e-4), "mismatch vs reference"

    print("KERNEL_OK")
</pallas_src>

<mosaic_0001>
module attributes {stable_mosaic.version = 11 : i64} {
  func.func @_attshrink_kernel(%arg0: i32, %arg1: i32, %arg2: memref<1x32x144xf32, #tpu.memory_space<vmem>>, %arg3: memref<32x32xf32, #tpu.memory_space<vmem>>, %arg4: memref<32x1xf32, #tpu.memory_space<vmem>>, %arg5: memref<9x32xf32, #tpu.memory_space<vmem>>, %arg6: memref<9x1xf32, #tpu.memory_space<vmem>>, %arg7: memref<1x9x144xf32, #tpu.memory_space<vmem>>) attributes {dimension_semantics = [#tpu.dimension_semantics<parallel>, #tpu.dimension_semantics<parallel>], iteration_bounds = array<i64: 2, 1>, scalar_prefetch = 0 : i64, scratch_operands = 0 : i64, tpu.core_type = #tpu.core_type<tc>, window_params = [{transform_indices = @transform_0, window_bounds = array<i64: 1, 32, 144>}, {pipeline_mode = #tpu.pipeline_mode<synchronous>, transform_indices = @transform_1, window_bounds = array<i64: 32, 32>}, {pipeline_mode = #tpu.pipeline_mode<synchronous>, transform_indices = @transform_2, window_bounds = array<i64: 32, 1>}, {pipeline_mode = #tpu.pipeline_mode<synchronous>, transform_indices = @transform_3, window_bounds = array<i64: 9, 32>}, {pipeline_mode = #tpu.pipeline_mode<synchronous>, transform_indices = @transform_4, window_bounds = array<i64: 9, 1>}, {transform_indices = @transform_5, window_bounds = array<i64: 1, 9, 144>}]} {
    %c0 = arith.constant 0 : index
    %c0_0 = arith.constant 0 : index
    %0 = vector.load %arg3[%c0, %c0_0] : memref<32x32xf32, #tpu.memory_space<vmem>>, vector<32x32xf32>
    %c0_1 = arith.constant 0 : index
    %c0_2 = arith.constant 0 : index
    %1 = vector.load %arg4[%c0_1, %c0_2] : memref<32x1xf32, #tpu.memory_space<vmem>>, vector<32x1xf32>
    %c0_3 = arith.constant 0 : index
    %c0_4 = arith.constant 0 : index
    %2 = vector.load %arg5[%c0_3, %c0_4] : memref<9x32xf32, #tpu.memory_space<vmem>>, vector<9x32xf32>
    %c0_5 = arith.constant 0 : index
    %c0_6 = arith.constant 0 : index
    %3 = vector.load %arg6[%c0_5, %c0_6] : memref<9x1xf32, #tpu.memory_space<vmem>>, vector<9x1xf32>
    %c0_7 = arith.constant 0 : index
    %c0_8 = arith.constant 0 : index
    %c0_9 = arith.constant 0 : index
    %4 = vector.load %arg2[%c0_7, %c0_8, %c0_9] : memref<1x32x144xf32, #tpu.memory_space<vmem>>, vector<1x32x144xf32>
    %5 = vector.shape_cast %4 : vector<1x32x144xf32> to vector<32x144xf32>
    %cst = arith.constant dense<0.000000e+00> : vector<32x144xf32>
    %6 = tpu.matmul %0, %5, %cst {dimension_numbers = #tpu.dot_dimension_numbers<[1], [0], [0], [1], [0, 0, 1, 1], [], []>} : vector<32x32xf32>, vector<32x144xf32>, vector<32x144xf32> -> vector<32x144xf32>
    %7 = vector.broadcast %1 : vector<32x1xf32> to vector<32x144xf32>
    %8 = arith.addf %6, %7 : vector<32x144xf32>
    %cst_10 = arith.constant 0.000000e+00 : f32
    %9 = vector.broadcast %cst_10 : f32 to vector<32x144xf32>
    %10 = arith.maximumf %8, %9 : vector<32x144xf32>
    %cst_11 = arith.constant dense<0.000000e+00> : vector<9x144xf32>
    %11 = tpu.matmul %2, %10, %cst_11 {dimension_numbers = #tpu.dot_dimension_numbers<[1], [0], [0], [1], [0, 0, 1, 1], [], []>} : vector<9x32xf32>, vector<32x144xf32>, vector<9x144xf32> -> vector<9x144xf32>
    %12 = vector.broadcast %3 : vector<9x1xf32> to vector<9x144xf32>
    %13 = arith.addf %11, %12 : vector<9x144xf32>
    %c0_12 = arith.constant 0 : index
    %c0_13 = arith.constant 0 : index
    %c0_14 = arith.constant 0 : index
    %14 = vector.load %arg7[%c0_12, %c0_13, %c0_14] : memref<1x9x144xf32, #tpu.memory_space<vmem>>, vector<1x9x144xf32>
    %15 = vector.shape_cast %14 : vector<1x9x144xf32> to vector<9x144xf32>
    %16 = vector.shape_cast %13 : vector<9x144xf32> to vector<1x9x144xf32>
    tpu.vector_store %arg7[%c0_12, %c0_13, %c0_14], %16 {strides = array<i32>} : memref<1x9x144xf32, #tpu.memory_space<vmem>>, vector<1x9x144xf32>,
    return
  }
  func.func @transform_0(%arg0: i32, %arg1: i32) -> (i32, i32, i32) {
    %c0_i32 = arith.constant 0 : i32
    %c0_i32_0 = arith.constant 0 : i32
    return %arg0, %c0_i32, %arg1 : i32, i32, i32
  }
  func.func @transform_1(%arg0: i32, %arg1: i32) -> (i32, i32) {
    %c0_i32 = arith.constant 0 : i32
    %c0_i32_0 = arith.constant 0 : i32
    %c0_i32_1 = arith.constant 0 : i32
    return %c0_i32, %c0_i32_0 : i32, i32
  }
  func.func @transform_2(%arg0: i32, %arg1: i32) -> (i32, i32) {
    %c0_i32 = arith.constant 0 : i32
    %c0_i32_0 = arith.constant 0 : i32
    %c0_i32_1 = arith.constant 0 : i32
    return %c0_i32, %c0_i32_0 : i32, i32
  }
  func.func @transform_3(%arg0: i32, %arg1: i32) -> (i32, i32) {
    %c0_i32 = arith.constant 0 : i32
    %c0_i32_0 = arith.constant 0 : i32
    %c0_i32_1 = arith.constant 0 : i32
    return %c0_i32, %c0_i32_0 : i32, i32
  }
  func.func @transform_4(%arg0: i32, %arg1: i32) -> (i32, i32) {
    %c0_i32 = arith.constant 0 : i32
    %c0_i32_0 = arith.constant 0 : i32
    %c0_i32_1 = arith.constant 0 : i32
    return %c0_i32, %c0_i32_0 : i32, i32
  }
  func.func @transform_5(%arg0: i32, %arg1: i32) -> (i32, i32, i32) {
    %c0_i32 = arith.constant 0 : i32
    %c0_i32_0 = arith.constant 0 : i32
    return %arg0, %c0_i32, %arg1 : i32, i32, i32
  }
}

</mosaic_0001>

<llo_original>
// kernel: tpu_custom_call.1
$region0: #{tpu_custom_call.1}
  #allocation0 [shape = 'u32[]', space=smem, size = 0x4, offset = 0x4, fixed_abs, tag = 'smem constant byte address 0x4 - core index']
  #allocation1 [shape = 'u32[144,128]{1,0:T(1,128)}', space=vmem, size = 0x12000, scoped, tag = 'internal scratch']
  %s0 = inlined_call_operand.hbm [shape: f32[2,32,144], index: 0, kind: input, shape index: {}]
  %s1 = inlined_call_operand.vmem [shape: f32[32,32], index: 1, kind: input, shape index: {}]
  %s2 = inlined_call_operand.vmem [shape: f32[32,1], index: 2, kind: input, shape index: {}]
  %s3 = inlined_call_operand.vmem [shape: f32[9,32], index: 3, kind: input, shape index: {}]
  %s4 = inlined_call_operand.vmem [shape: f32[9,1], index: 4, kind: input, shape index: {}]
  %s5 = inlined_call_operand.vmem [shape: f32[2,9,144], index: 5, kind: output, shape index: {}]
  %s6 = sld [smem:[#allocation0]]
  $region57: #{tpu_custom_call.1} parent=0
    _
  %s8 = ssub.s32 1, %s6
  %s9 = scalar_select 0, %s8, %s6
  $region1: #{tpu_custom_call.1} parent=0
    #allocation2 [shape = 'u8[65536]{0}', space=vmem, size = 0x10000, scoped, tag = 'input window, operand 0']
    #allocation3 [shape = 's32[2]{0}', space=sflag, size = 0x8, scoped, tag = 'scoped memory for tpu_custom_call.1']
    %10 = vsyncpa [#allocation3], 0
    %s11 = scalar_lea.sflag [#allocation3], 1
    %12 = vsyncpa %s11, 0
    loop: start=0, step=1, limit=4
    $region2: #{tpu_custom_call.1} parent=1 // loop_pre_header
      _
    $region3: #{tpu_custom_call.1} parent=1 // loop_header
      %s14 = sphi 0, %s18
      %p15 = scmp.ge.s32.totalorder %s14, 4
      %s21 = sphi 0, %s33
      %s22 = sphi 0, %s29
      %s23 = sphi 0, %s21
      %s24 = sphi 0, %s22
      %s25 = sphi 0, %s23
      %s26 = sphi 0, %s24
      %s38 = sphi 0, %s40
      %s41 = sphi 0, %s38
      %s42 = sphi 0, %s41
      %s58 = sphi 0, %s42
      %s62 = sphi 0, %s62
      %s64 = sphi 0, %s62
      %s65 = sphi 0, %s64
      %s79 = sphi 0, %s65
      %s83 = sphi 0, %s83
      %s85 = sphi 0, %s83
      %s86 = sphi 0, %s85
      %s100 = sphi 0, %s86
      %s104 = sphi 0, %s104
      %s106 = sphi 0, %s104
      %s107 = sphi 0, %s106
      %s121 = sphi 0, %s107
      %s125 = sphi 0, %s125
      %s127 = sphi 0, %s125
      %s128 = sphi 0, %s127
      %s142 = sphi 0, %s128
      %s150 = sphi 0, %s152
      %s153 = sphi 0, %s150
      %s154 = sphi 0, %s153
      %s170 = sphi 0, %s154
    $region4: #{tpu_custom_call.1} parent=1 // loop_header_branch
      %17 = sbr.rel (%p15) target = $region8
    $region5: #{tpu_custom_call.1} parent=1 // loop_body
      %s19 = ssub.s32 %s14, 1
      %s20 = ssub.s32 %s14, 2
      %s27 = sadd.s32 1, %s22
      %p28 = scmp.ge.s32.totalorder %s27, 1
      %s29 = scalar_select %p28, 0, %s27
      %s30 = sadd.s32 1, %s21
      %s31 = scalar_select %p28, %s30, %s21
      %p32 = scmp.ge.s32.totalorder %s31, 2
      %s33 = scalar_select %p32, 0, %s31
      %s34 = ssub.s32 %s21, %s33
      %s35 = ssub.s32 %s22, %s29
      %s36 = sor.u32 %s34, %s35
      %p37 = scmp.eq.s32.totalorder %s36, 0
      %s39 = sadd.s32 %s38, 1
      %s40 = scalar_select %p37, %s38, %s39
      %p43 = pneg %p37
      %p44 = scmp.eq.s32.totalorder %s14, 1
      %p45 = por %p43, %p44
      %p46 = scmp.ne.s32.totalorder %s38, %s41
      %p47 = scmp.eq.s32.totalorder %s14, 0
      %p48 = por %p46, %p47
      %p49 = scmp.ne.s32.totalorder %s38, %s41
      %p50 = scmp.eq.s32.totalorder %s19, 1
      %p51 = por %p49, %p50
      %p52 = scmp.ne.s32.totalorder %s41, %s42
      %p53 = scmp.eq.s32.totalorder %s19, 0
      %p54 = por %p52, %p53
      %p55 = scmp.ne.s32.totalorder %s41, %s42
      %p56 = scmp.eq.s32.totalorder %s20, 1
      %p57 = por %p55, %p56
      %p59 = scmp.ne.s32.totalorder %s42, %s58
      %p60 = scmp.eq.s32.totalorder %s20, 0
      %p61 = por %p59, %p60
      %s63 = sadd.s32 %s62, 1
      %p66 = scmp.eq.s32.totalorder %s14, 1
      %p67 = scmp.ne.s32.totalorder %s62, %s64
      %p68 = scmp.eq.s32.totalorder %s14, 0
      %p69 = por %p67, %p68
      %p70 = scmp.ne.s32.totalorder %s62, %s64
      %p71 = scmp.eq.s32.totalorder %s19, 1
      %p72 = por %p70, %p71
      %p73 = scmp.ne.s32.totalorder %s64, %s65
      %p74 = scmp.eq.s32.totalorder %s19, 0
      %p75 = por %p73, %p74
      %p76 = scmp.ne.s32.totalorder %s64, %s65
      %p77 = scmp.eq.s32.totalorder %s20, 1
      %p78 = por %p76, %p77
      %p80 = scmp.ne.s32.totalorder %s65, %s79
      %p81 = scmp.eq.s32.totalorder %s20, 0
      %p82 = por %p80, %p81
      %s84 = sadd.s32 %s83, 1
      %p87 = scmp.eq.s32.totalorder %s14, 1
      %p88 = scmp.ne.s32.totalorder %s83, %s85
      %p89 = scmp.eq.s32.totalorder %s14, 0
      %p90 = por %p88, %p89
      %p91 = scmp.ne.s32.totalorder %s83, %s85
      %p92 = scmp.eq.s32.totalorder %s19, 1
      %p93 = por %p91, %p92
      %p94 = scmp.ne.s32.totalorder %s85, %s86
      %p95 = scmp.eq.s32.totalorder %s19, 0
      %p96 = por %p94, %p95
      %p97 = scmp.ne.s32.totalorder %s85, %s86
      %p98 = scmp.eq.s32.totalorder %s20, 1
      %p99 = por %p97, %p98
      %p101 = scmp.ne.s32.totalorder %s86, %s100
      %p102 = scmp.eq.s32.totalorder %s20, 0
      %p103 = por %p101, %p102
      %s105 = sadd.s32 %s104, 1
      %p108 = scmp.eq.s32.totalorder %s14, 1
      %p109 = scmp.ne.s32.totalorder %s104, %s106
      %p110 = scmp.eq.s32.totalorder %s14, 0
      %p111 = por %p109, %p110
      %p112 = scmp.ne.s32.totalorder %s104, %s106
      %p113 = scmp.eq.s32.totalorder %s19, 1
      %p114 = por %p112, %p113
      %p115 = scmp.ne.s32.totalorder %s106, %s107
      %p116 = scmp.eq.s32.totalorder %s19, 0
      %p117 = por %p115, %p116
      %p118 = scmp.ne.s32.totalorder %s106, %s107
      %p119 = scmp.eq.s32.totalorder %s20, 1
      %p120 = por %p118, %p119
      %p122 = scmp.ne.s32.totalorder %s107, %s121
      %p123 = scmp.eq.s32.totalorder %s20, 0
      %p124 = por %p122, %p123
      %s126 = sadd.s32 %s125, 1
      %p129 = scmp.eq.s32.totalorder %s14, 1
      %p130 = scmp.ne.s32.totalorder %s125, %s127
      %p131 = scmp.eq.s32.totalorder %s14, 0
      %p132 = por %p130, %p131
      %p133 = scmp.ne.s32.totalorder %s125, %s127
      %p134 = scmp.eq.s32.totalorder %s19, 1
      %p135 = por %p133, %p134
      %p136 = scmp.ne.s32.totalorder %s127, %s128
      %p137 = scmp.eq.s32.totalorder %s19, 0
      %p138 = por %p136, %p137
      %p139 = scmp.ne.s32.totalorder %s127, %s128
      %p140 = scmp.eq.s32.totalorder %s20, 1
      %p141 = por %p139, %p140
      %p143 = scmp.ne.s32.totalorder %s128, %s142
      %p144 = scmp.eq.s32.totalorder %s20, 0
      %p145 = por %p143, %p144
      %s146 = ssub.s32 %s21, %s33
      %s147 = ssub.s32 %s22, %s29
      %s148 = sor.u32 %s146, %s147
      %p149 = scmp.eq.s32.totalorder %s148, 0
      %s151 = sadd.s32 %s150, 1
      %s152 = scalar_select %p149, %s150, %s151
      %p155 = pneg %p149
      %p156 = scmp.eq.s32.totalorder %s14, 1
      %p157 = por %p155, %p156
      %p158 = scmp.ne.s32.totalorder %s150, %s153
      %p159 = scmp.eq.s32.totalorder %s14, 0
      %p160 = por %p158, %p159
      %p161 = scmp.ne.s32.totalorder %s150, %s153
      %p162 = scmp.eq.s32.totalorder %s19, 1
      %p163 = por %p161, %p162
      %p164 = scmp.ne.s32.totalorder %s153, %s154
      %p165 = scmp.eq.s32.totalorder %s19, 0
      %p166 = por %p164, %p165
      %p167 = scmp.ne.s32.totalorder %s153, %s154
      %p168 = scmp.eq.s32.totalorder %s20, 1
      %p169 = por %p167, %p168
      %p171 = scmp.ne.s32.totalorder %s154, %s170
      %p172 = scmp.eq.s32.totalorder %s20, 0
      %p173 = por %p171, %p172
      %p174 = scmp.le.s32.totalorder 1, %s14
      %p175 = scmp.lt.s32.totalorder %s14, 3
      %p176 = pnand %p174, %p175
      %p177 = pneg %p176
      // Predicated region
      $region9: #{tpu_custom_call.1} parent=5 // pred_check
        _
      $region10: #{tpu_custom_call.1} parent=5 // pred_check_branch
        %179 = sbr.rel (%p176) target = $region12
      $region11: #{tpu_custom_call.1} parent=5 // pred_region
        %s180 = ssub.s32 %s14, 1
        // Predicated region
        $region13: #{tpu_custom_call.1} parent=11 // pred_check
          %p181 = pneg %p75
        $region14: #{tpu_custom_call.1} parent=11 // pred_check_branch
          %183 = sbr.rel (%p181) target = $region16
        $region15: #{tpu_custom_call.1} parent=11 // pred_region
          _
        $region16: #{tpu_custom_call.1} parent=11 // pred_fallthru
          _
        // Predicated region
        $region17: #{tpu_custom_call.1} parent=11 // pred_check
          %p184 = pneg %p96
        $region18: #{tpu_custom_call.1} parent=11 // pred_check_branch
          %186 = sbr.rel (%p184) target = $region20
        $region19: #{tpu_custom_call.1} parent=11 // pred_region
          _
        $region20: #{tpu_custom_call.1} parent=11 // pred_fallthru
          _
        // Predicated region
        $region21: #{tpu_custom_call.1} parent=11 // pred_check
          %p187 = pneg %p117
        $region22: #{tpu_custom_call.1} parent=11 // pred_check_branch
          %189 = sbr.rel (%p187) target = $region24
        $region23: #{tpu_custom_call.1} parent=11 // pred_region
          _
        $region24: #{tpu_custom_call.1} parent=11 // pred_fallthru
          _
        // Predicated region
        $region25: #{tpu_custom_call.1} parent=11 // pred_check
          %p190 = pneg %p138
        $region26: #{tpu_custom_call.1} parent=11 // pred_check_branch
          %192 = sbr.rel (%p190) target = $region28
        $region27: #{tpu_custom_call.1} parent=11 // pred_region
          _
        $region28: #{tpu_custom_call.1} parent=11 // pred_fallthru
          _
      $region12: #{tpu_custom_call.1} parent=5 // pred_fallthru
        _
      %p193 = scmp.lt.s32.totalorder %s14, 2
      // Predicated region
      $region29: #{tpu_custom_call.1} parent=5 // pred_check
        %p194 = pneg %p193
      $region30: #{tpu_custom_call.1} parent=5 // pred_check_branch
        %196 = sbr.rel (%p194) target = $region32
      $region31: #{tpu_custom_call.1} parent=5 // pred_region
        // Predicated region
        $region33: #{tpu_custom_call.1} parent=31 // pred_check
          %p197 = pneg %p48
        $region34: #{tpu_custom_call.1} parent=31 // pred_check_branch
          %199 = sbr.rel (%p197) target = $region36
        $region35: #{tpu_custom_call.1} parent=31 // pred_region
          %s200 = sand.u32 %s38, 1
          %s201 = scalar_lea.sflag [#allocation3], %s200
          %s202 = sand.u32 %s38, 1
          %s203 = smul.addr %s202, 64
          %s204 = scalar_lea.vmem [#allocation2], %s203
          %s205 = smul.u32 2, %s22
          %s207 = ssub.s32 1024, 1024
          %208 = vsyncadd %s201, %s207
          %s209 = smul.addr %s21, 8
          %s210 = sadd.s32 %s205, %s209
          %s211 = smul.addr %s210, 128
          %s212 = scalar_lea.hbm %s0, %s211
          %s213 = sshll.u32 %s204, 4
          %s214 = int_to_ptr.vmem [resolvable:$true] %s213
          %219 = dma.hbm_to_vmem [thread:$0]  %s212, 1024, %s214, %s201, 256, 256, 16
        $region36: #{tpu_custom_call.1} parent=31 // pred_fallthru
          _
      $region32: #{tpu_custom_call.1} parent=5 // pred_fallthru
        _
      %p220 = scmp.le.s32.totalorder 1, %s14
      %p221 = scmp.lt.s32.totalorder %s14, 3
      %p222 = pnand %p220, %p221
      %p223 = pneg %p222
      // Predicated region
      $region37: #{tpu_custom_call.1} parent=5 // pred_check
        _
      $region38: #{tpu_custom_call.1} parent=5 // pred_check_branch
        %225 = sbr.rel (%p222) target = $region40
      $region39: #{tpu_custom_call.1} parent=5 // pred_region
        %s226 = ssub.s32 %s14, 1
        %s227 = sand.u32 %s41, 1
        %s228 = scalar_lea.sflag [#allocation3], %s227
        %s229 = sand.u32 %s41, 1
        %s230 = smul.addr %s229, 64
        %s231 = scalar_lea.vmem [#allocation2], %s230
        // Predicated region
        $region41: #{tpu_custom_call.1} parent=39 // pred_check
          %p232 = pneg %p54
        $region42: #{tpu_custom_call.1} parent=39 // pred_check_branch
          %234 = sbr.rel (%p232) target = $region44
        $region43: #{tpu_custom_call.1} parent=39 // pred_region
          %235 = dma.done %s228, 1024
        $region44: #{tpu_custom_call.1} parent=39 // pred_fallthru
          _
        %s236 = sand.u32 %s41, 1
        %s237 = scalar_lea.sflag [#allocation3], %s236
        %s238 = sand.u32 %s41, 1
        %s239 = smul.addr %s238, 64
        %s240 = scalar_lea.vmem [#allocation2], %s239
        %p241 = pneg %p54
        %p242 = pneg %p51
        %p243 = pneg %p75
        %p244 = pneg %p72
        %p245 = pneg %p96
        %p246 = pneg %p93
        %p247 = pneg %p117
        %p248 = pneg %p114
        %p249 = pneg %p138
        %p250 = pneg %p135
        %p251 = pneg %p166
        %p252 = pneg %p163
        %s253 = smul.u32 2, %s24
        %p254 = scmp.lt.s32.totalorder %s23, 1
        %s255 = scalar_select %p254, %s23, 1
        %p256 = scmp.lt.s32.totalorder %s253, 1
        %s257 = scalar_select %p256, %s253, 1
        %s258 = smul.addr %s255, 4
        %s259 = sadd.s32 %s257, %s258
        %s260 = smul.addr %s259, 8
        %s261 = scalar_lea.vmem %s5, %s260
        %s262 = smul.u32 2, %s24
        %s263 = smul.u32 2, %s24
        %p264 = scmp.lt.s32.totalorder %s23, 1
        %s265 = scalar_select %p264, %s23, 1
        %p266 = scmp.lt.s32.totalorder %s263, 1
        %s267 = scalar_select %p266, %s263, 1
        %s268 = smul.addr %s265, 4
        %s269 = sadd.s32 %s267, %s268
        %s270 = smul.addr %s269, 8
        %s271 = scalar_lea.vmem %s5, %s270
        %s272 = smul.u32 2, %s24
        %v273 = vld [vmem:[%s1] sm:$0xff]
        %v274 = vld [vmem:[%s1 + $0x8] sm:$0xff]
        %v275 = vld [vmem:[%s1 + $0x10] sm:$0xff]
        %v276 = vld [vmem:[%s1 + $0x18] sm:$0xff]
        %v277 = vld [vmem:[%s2] sm:$0xff]
        %v278 = vld [vmem:[%s2 + $0x8] sm:$0xff]
        %v279 = vld [vmem:[%s2 + $0x10] sm:$0xff]
        %v280 = vld [vmem:[%s2 + $0x18] sm:$0xff]
        %v281 = vld [vmem:[%s3] sm:$0xff]
        %v282 = vld [vmem:[%s3 + $0x8] sm:$0x1]
        %v283 = vld [vmem:[%s4] sm:$0xff]
        %v284 = vld [vmem:[%s4 + $0x8] sm:$0x1]
        %v285 = vld [vmem:[%s231] sm:$0xff]
        %v286 = vld [vmem:[%s231 + $0x8] sm:$0xff]
        %v287 = vld [vmem:[%s231 + $0x10] sm:$0xff]
        %v288 = vld [vmem:[%s231 + $0x18] sm:$0xff]
        %v289 = vld [vmem:[%s231 + $0x20] sm:$0xff]
        %v290 = vld [vmem:[%s231 + $0x28] sm:$0xff]
        %v291 = vld [vmem:[%s231 + $0x30] sm:$0xff]
        %v292 = vld [vmem:[%s231 + $0x38] sm:$0xff]
        %294 = vset.pattern.permute.xlu0 0
        %295 = vperm.xlu0 %294, %v277
        %v296 = vpop.permute.xlu0 %295
        %299 = vset.pattern.permute.xlu0 0
        %300 = vperm.xlu0 %299, %v278
        %v301 = vpop.permute.xlu0 %300
        %304 = vset.pattern.permute.xlu0 0
        %305 = vperm.xlu0 %304, %v279
        %v306 = vpop.permute.xlu0 %305
        %309 = vset.pattern.permute.xlu0 0
        %310 = vperm.xlu0 %309, %v280
        %v311 = vpop.permute.xlu0 %310
        %vm313 = vcmask 261120
        %v315 = vsel %vm313, %v273, 0
        %v318 = vsel %vm313, %v274, 0
        %v321 = vsel %vm313, %v275, 0
        %v324 = vsel %vm313, %v276, 0
        %326 = vmatprep.subr.mxu0 %v286
        %327 = vmatpush1.msra.mxu0 %v285
        %328 = vmatprep.subr.mxu0 %v288
        %329 = vmatpush1.msra.mxu0 %v287
        %330 = vmatprep.subr.mxu0 %v290
        %331 = vmatpush1.msra.mxu0 %v289
        %332 = vmatprep.subr.mxu0 %v292
        %333 = vmatpush1.msra.mxu0 %v291
        %334 = vmatprep.subr.mxu0 0.0
        %335 = vmatpush1.msra.mxu0 0.0
        %336 = vmatprep.subr.mxu0 0.0
        %337 = vmatpush1.msra.mxu0 0.0
        %338 = vmatprep.subr.mxu0 0.0
        %339 = vmatpush1.msra.mxu0 0.0
        %340 = vmatprep.subr.mxu0 0.0
        %341 = vmatpush1.msra.mxu0 0.0
        %342 = vmatprep.subr.mxu0 0.0
        %343 = vmatpush1.msra.mxu0 0.0
        %344 = vmatprep.subr.mxu0 0.0
        %345 = vmatpush1.msra.mxu0 0.0
        %346 = vmatprep.subr.mxu0 0.0
        %347 = vmatpush1.msra.mxu0 0.0
        %348 = vmatprep.subr.mxu0 0.0
        %349 = vmatpush1.msra.mxu0 0.0
        %350 = vmatprep.subr.mxu0 0.0
        %351 = vmatpush1.msra.mxu0 0.0
        %352 = vmatprep.subr.mxu0 0.0
        %353 = vmatpush1.msra.mxu0 0.0
        %354 = vmatprep.subr.mxu0 0.0
        %355 = vmatpush1.msra.mxu0 0.0
        %356 = vmatprep.subr.mxu0 0.0
        %357 = vmatpush1.msra.mxu0 0.0
        %358 = vmatprep.subr.mxu0 0.0
        %359 = vmatpush1.msra.mxu0 0.0
        %360 = vmatprep.subr.mxu0 0.0
        %361 = vmatpush1.msra.mxu0 0.0
        %362 = vmatprep.subr.mxu0 0.0
        %363 = vmatpush1.msra.mxu0 0.0
        %364 = vmatprep.subr.mxu0 0.0
        %365 = vmatpush1.msra.mxu0 0.0
        %366 = vmatprep.subr.mxu0 0.0
        %367 = vmatpush1.msra.mxu0 0.0
        %368 = vmatprep.subr.mxu0 0.0
        %369 = vmatpush1.msra.mxu0 0.0
        %370 = vmatprep.subr.mxu0 0.0
        %371 = vmatpush1.msra.mxu0 0.0
        %372 = vmatprep.subr.mxu0 0.0
        %373 = vmatpush1.msra.mxu0 0.0
        %374 = vmatprep.subr.mxu0 0.0
        %375 = vmatpush1.msra.mxu0 0.0
        %376 = vmatprep.subr.mxu0 0.0
        %377 = vmatpush1.msra.mxu0 0.0
        %378 = vmatprep.subr.mxu0 0.0
        %379 = vmatpush1.msra.mxu0 0.0
        %380 = vmatprep.subr.mxu0 0.0
        %381 = vmatpush1.msra.mxu0 0.0
        %382 = vmatprep.subr.mxu0 0.0
        %383 = vmatpush1.msra.mxu0 0.0
        %384 = vmatprep.subr.mxu0 0.0
        %385 = vmatpush1.msra.mxu0 0.0
        %386 = vmatprep.subr.mxu0 0.0
        %387 = vmatpush1.msra.mxu0 0.0
        %388 = vmatprep.subr.mxu0 0.0
        %389 = vmatpush1.msra.mxu0 0.0
        %390 = vmatprep.mubr.f32.mxu0 0.0
        %391 = vmatmul.mubr.f32.gmra.mrb[0].mxu0 %v315
        %v392 = vpop.f32.mrb[0].mxu0
        %v393 = vadd.f32 %v296, %v392
        %v394 = vpop.f32.mrb[0].mxu0
        %v395 = vadd.f32 %v296, %v394
        %396 = vmatprep.mubr.f32.mxu0 0.0
        %397 = vmatmul.mubr.f32.gmra.mrb[0].mxu0 %v318
        %v398 = vpop.f32.mrb[0].mxu0
        %v399 = vadd.f32 %v301, %v398
        %v400 = vpop.f32.mrb[0].mxu0
        %v401 = vadd.f32 %v301, %v400
        %402 = vmatprep.mubr.f32.mxu0 0.0
        %403 = vmatmul.mubr.f32.gmra.mrb[0].mxu0 %v321
        %v404 = vpop.f32.mrb[0].mxu0
        %v405 = vadd.f32 %v306, %v404
        %v406 = vpop.f32.mrb[0].mxu0
        %v407 = vadd.f32 %v306, %v406
        %408 = vmatprep.mubr.f32.mxu0 0.0
        %409 = vmatmul.mubr.f32.gmra.mrb[0].mxu0 %v324
        %v410 = vpop.f32.mrb[0].mxu0
        %v411 = vadd.f32 %v311, %v410
        %v412 = vpop.f32.mrb[0].mxu0
        %v413 = vadd.f32 %v311, %v412
        %414 = vdwg.mxu0
        %v415 = vmax.f32 %v393, 0.0
        %v416 = vmax.f32 %v395, 0.0
        %v417 = vmax.f32 %v399, 0.0
        %v418 = vmax.f32 %v401, 0.0
        %v419 = vmax.f32 %v405, 0.0
        %v420 = vmax.f32 %v407, 0.0
        %v421 = vmax.f32 %v411, 0.0
        %v422 = vmax.f32 %v413, 0.0
        %424 = vset.pattern.permute.xlu0 0
        %425 = vperm.xlu0 %424, %v283
        %v426 = vpop.permute.xlu0 %425
        %429 = vset.pattern.permute.xlu0 0
        %430 = vperm.xlu0 %429, %v284
        %v431 = vpop.permute.xlu0 %430
        %v434 = vsel %vm313, %v281, 0
        %v437 = vsel %vm313, %v282, 0
        %439 = vmatprep.subr.mxu0 %v416
        %440 = vmatpush1.msra.mxu0 %v415
        %441 = vmatprep.subr.mxu0 %v418
        %442 = vmatpush1.msra.mxu0 %v417
        %443 = vmatprep.subr.mxu0 %v420
        %444 = vmatpush1.msra.mxu0 %v419
        %445 = vmatprep.subr.mxu0 %v422
        %446 = vmatpush1.msra.mxu0 %v421
        %447 = vmatprep.subr.mxu0 0.0
        %448 = vmatpush1.msra.mxu0 0.0
        %449 = vmatprep.subr.mxu0 0.0
        %450 = vmatpush1.msra.mxu0 0.0
        %451 = vmatprep.subr.mxu0 0.0
        %452 = vmatpush1.msra.mxu0 0.0
        %453 = vmatprep.subr.mxu0 0.0
        %454 = vmatpush1.msra.mxu0 0.0
        %455 = vmatprep.subr.mxu0 0.0
        %456 = vmatpush1.msra.mxu0 0.0
        %457 = vmatprep.subr.mxu0 0.0
        %458 = vmatpush1.msra.mxu0 0.0
        %459 = vmatprep.subr.mxu0 0.0
        %460 = vmatpush1.msra.mxu0 0.0
        %461 = vmatprep.subr.mxu0 0.0
        %462 = vmatpush1.msra.mxu0 0.0
        %463 = vmatprep.subr.mxu0 0.0
        %464 = vmatpush1.msra.mxu0 0.0
        %465 = vmatprep.subr.mxu0 0.0
        %466 = vmatpush1.msra.mxu0 0.0
        %467 = vmatprep.subr.mxu0 0.0
        %468 = vmatpush1.msra.mxu0 0.0
        %469 = vmatprep.subr.mxu0 0.0
        %470 = vmatpush1.msra.mxu0 0.0
        %471 = vmatprep.subr.mxu0 0.0
        %472 = vmatpush1.msra.mxu0 0.0
        %473 = vmatprep.subr.mxu0 0.0
        %474 = vmatpush1.msra.mxu0 0.0
        %475 = vmatprep.subr.mxu0 0.0
        %476 = vmatpush1.msra.mxu0 0.0
        %477 = vmatprep.subr.mxu0 0.0
        %478 = vmatpush1.msra.mxu0 0.0
        %479 = vmatprep.subr.mxu0 0.0
        %480 = vmatpush1.msra.mxu0 0.0
        %481 = vmatprep.subr.mxu0 0.0
        %482 = vmatpush1.msra.mxu0 0.0
        %483 = vmatprep.subr.mxu0 0.0
        %484 = vmatpush1.msra.mxu0 0.0
        %485 = vmatprep.subr.mxu0 0.0
        %486 = vmatpush1.msra.mxu0 0.0
        %487 = vmatprep.subr.mxu0 0.0
        %488 = vmatpush1.msra.mxu0 0.0
        %489 = vmatprep.subr.mxu0 0.0
        %490 = vmatpush1.msra.mxu0 0.0
        %491 = vmatprep.subr.mxu0 0.0
        %492 = vmatpush1.msra.mxu0 0.0
        %493 = vmatprep.subr.mxu0 0.0
        %494 = vmatpush1.msra.mxu0 0.0
        %495 = vmatprep.subr.mxu0 0.0
        %496 = vmatpush1.msra.mxu0 0.0
        %497 = vmatprep.subr.mxu0 0.0
        %498 = vmatpush1.msra.mxu0 0.0
        %499 = vmatprep.subr.mxu0 0.0
        %500 = vmatpush1.msra.mxu0 0.0
        %501 = vmatprep.subr.mxu0 0.0
        %502 = vmatpush1.msra.mxu0 0.0
        %503 = vmatprep.mubr.f32.mxu0 0.0
        %504 = vmatmul.mubr.f32.gmra.mrb[0].mxu0 %v434
        %v505 = vpop.f32.mrb[0].mxu0
        %v506 = vadd.f32 %v426, %v505
        %v507 = vpop.f32.mrb[0].mxu0
        %v508 = vadd.f32 %v426, %v507
        %509 = vmatprep.mubr.f32.mxu0 0.0
        %510 = vmatmul.mubr.f32.gmra.mrb[0].mxu0 %v437
        %v511 = vpop.f32.mrb[0].mxu0
        %v512 = vadd.f32 %v431, %v511
        %v513 = vpop.f32.mrb[0].mxu0
        %v514 = vadd.f32 %v431, %v513
        %515 = vdwg.mxu0
        %516 = vst [vmem:[%s271] sm:$0xff] %v506
        %vm517 = vcmask 130048
        %518 = vst.msk [vmem:[%s271 + $0x8] sm:$0xff] %vm517, %v508
        %519 = vst [vmem:[%s271 + $0x10] sm:$0x1] %v512
        %vm520 = vcmask 122880
        %521 = vst.msk [vmem:[%s271 + $0x18] sm:$0x1] %vm520, %v514
        %s522 = smul.u32 2, %s24
        %p523 = scmp.lt.s32.totalorder %s23, 1
        %s524 = scalar_select %p523, %s23, 1
        %p525 = scmp.lt.s32.totalorder %s522, 1
        %s526 = scalar_select %p525, %s522, 1
        %s527 = smul.addr %s524, 4
        %s528 = sadd.s32 %s526, %s527
        %s529 = smul.addr %s528, 8
        %s530 = scalar_lea.vmem %s5, %s529
        // Predicated region
        $region45: #{tpu_custom_call.1} parent=39 // pred_check
          %p531 = pneg %p163
        $region46: #{tpu_custom_call.1} parent=39 // pred_check_branch
          %533 = sbr.rel (%p531) target = $region48
        $region47: #{tpu_custom_call.1} parent=39 // pred_region
          %s534 = smul.u32 2, %s24
        $region48: #{tpu_custom_call.1} parent=39 // pred_fallthru
          _
      $region40: #{tpu_custom_call.1} parent=5 // pred_fallthru
        _
      %p535 = scmp.le.s32.totalorder 2, %s14
      // Predicated region
      $region49: #{tpu_custom_call.1} parent=5 // pred_check
        %p536 = pneg %p535
      $region50: #{tpu_custom_call.1} parent=5 // pred_check_branch
        %538 = sbr.rel (%p536) target = $region52
      $region51: #{tpu_custom_call.1} parent=5 // pred_region
        %s539 = ssub.s32 %s14, 2
        // Predicated region
        $region53: #{tpu_custom_call.1} parent=51 // pred_check
          %p540 = pneg %p169
        $region54: #{tpu_custom_call.1} parent=51 // pred_check_branch
          %542 = sbr.rel (%p540) target = $region56
        $region55: #{tpu_custom_call.1} parent=51 // pred_region
          %s543 = smul.u32 2, %s26
          %p544 = scmp.lt.s32.totalorder %s25, 1
          %s545 = scalar_select %p544, %s25, 1
          %p546 = scmp.lt.s32.totalorder %s543, 1
          %s547 = scalar_select %p546, %s543, 1
          %s548 = smul.addr %s545, 4
          %s549 = sadd.s32 %s547, %s548
          %s550 = smul.addr %s549, 8
          %s551 = scalar_lea.vmem %s5, %s550
        $region56: #{tpu_custom_call.1} parent=51 // pred_fallthru
          _
      $region52: #{tpu_custom_call.1} parent=5 // pred_fallthru
        _
    $region6: #{tpu_custom_call.1} parent=1 // loop_footer
      %s18 = sadd.s32 1, %s14
    $region7: #{tpu_custom_call.1} parent=1 // loop_footer_branch
      %13 = sbr.rel target = $region3
    $region8: #{tpu_custom_call.1} parent=1 // loop_exit
      _
    %552 = vsyncpa [#allocation3], 1
    %s553 = scalar_lea.sflag [#allocation3], 1
    %554 = vsyncpa %s553, 1

</llo_original>
